<compile_context>
chip_gen: v7x
topology: tpu7x:2x2x1
jax: 0.10.0
libtpu: 0.0.40
codegen_flags: <defaults>
</compile_context>

<pallas_src>
import jax
import jax.numpy as jnp
from jax.experimental import pallas as pl
from jax.experimental.pallas import tpu as pltpu


def _mlp_head_kernel(cls_ref,                     # (B,) int32 in SMEM (prefetched; unused in body)
                     x_ref,                       # (c_in, tile_n)  bf16, lane axis = points
                     w1_ref, b1_ref,              # (feat, c_in) bf16 / (feat, 1) f32
                     w2_ref, b2_ref,              # (feat, feat) bf16 / (feat, 1) f32
                     wh_ref, bh_ref,              # (h_out, feat+c_in) bf16 / (h_out, 1) f32
                     whsel_ref, bhsel_ref,        # (out_size, feat+c_in) bf16 / (out_size, 1) f32
                     o_all_ref, o_sel_ref):       # (h_out, tile_n) / (out_size, tile_n) bf16
    del cls_ref  # selection is done via the cls-dependent index_map on whsel/bhsel

    x = x_ref[...]                                                   # (c_in, T) bf16

    # Conv1d(1x1) + folded BN + ReLU  (f32 accumulate, f32 elementwise)
    h1 = jnp.dot(w1_ref[...], x, preferred_element_type=jnp.float32) + b1_ref[...]
    h1 = jnp.maximum(h1, 0.0)

    h2 = jnp.dot(w2_ref[...], h1.astype(w2_ref.dtype),
                 preferred_element_type=jnp.float32) + b2_ref[...]
    h2 = jnp.maximum(h2, 0.0)

    # Skip concat [features; input] built once in bf16 -> single K=128 head matmul.
    cat = jnp.concatenate([h2.astype(x.dtype), x], axis=0)           # (feat+c_in, T)

    # All parallel heads.
    logits = jnp.dot(wh_ref[...], cat, preferred_element_type=jnp.float32) + bh_ref[...]
    o_all_ref[...] = logits.astype(o_all_ref.dtype)                  # lane-dense store

    # Selected head (weights for head cls[b] delivered via BlockSpec index_map).
    sel = jnp.dot(whsel_ref[...], cat, preferred_element_type=jnp.float32) + bhsel_ref[...]
    o_sel_ref[...] = sel.astype(o_sel_ref.dtype)


def init_params(key, in_size, feat_dim, out_size, num_classes):
    """PyTorch-Conv1d-style uniform init; eval-mode BatchNorm folded in.

    Weights are stored (C_out, C_in) (channels-first matmul orientation).
    The head weight acts on concat([features, input]) -> columns are
    [0:feat_dim] for h2 and [feat_dim:feat_dim+in_size] for the skip input.
    Rows are grouped per head: head c owns rows [c*out_size:(c+1)*out_size].
    """
    ks = jax.random.split(key, 6)

    def uni(k, shape, fan_in):
        bound = 1.0 / jnp.sqrt(jnp.float32(fan_in))
        return jax.random.uniform(k, shape, jnp.float32, -bound, bound)

    h_out = num_classes * out_size
    head_in = feat_dim + in_size            # skip=True -> concat([features, input])

    w1 = uni(ks[0], (feat_dim, in_size), in_size)
    b1 = uni(ks[1], (feat_dim, 1), in_size)
    w2 = uni(ks[2], (feat_dim, feat_dim), feat_dim)
    b2 = uni(ks[3], (feat_dim, 1), feat_dim)
    wh = uni(ks[4], (h_out, head_in), head_in)
    bh = uni(ks[5], (h_out, 1), head_in)

    # BatchNorm1d eval with default gamma=1, beta=0, mean=0, var=1:
    # y = z / sqrt(1 + eps) -> single scale folded into W and b.
    # TODO(synk): with trained running stats fold per-channel scale + bias shift.
    scale = 1.0 / jnp.sqrt(1.0 + 1e-5)
    return dict(w1=w1 * scale, b1=b1 * scale, w2=w2 * scale, b2=b2 * scale,
                wh=wh, bh=bh)


def mlp_classifier_forward(params, points_feats, cls, num_classes, out_size,
                           tile_n=2048, compute_dtype=jnp.bfloat16,
                           out_dtype=jnp.bfloat16):
    """points_feats: (B, in_size, N) channels-first (PyTorch layout); cls: (B,) int.

    Returns (selected, all_logits):
      selected   (B, out_size, N)               logits of the head picked by `cls`
      all_logits (B, num_classes, out_size, N)  every parallel head
    """
    B, c_in, N = points_feats.shape
    h_out = params["bh"].shape[0]
    assert h_out == num_classes * out_size
    head_in = params["wh"].shape[1]

    tile_n = min(tile_n, N)
    assert N % tile_n == 0 and tile_n % 128 == 0, "N must tile into multiples of 128"
    # v7x megacore: prefer an even number of parallel grid steps so neither
    # TensorCore sits idle (only adjust when it keeps 128-lane alignment).
    if (B * (N // tile_n)) % 2 == 1 and tile_n % 256 == 0:
        tile_n //= 2

    # Channels-first in, channels-first out: no boundary transposes.
    x = points_feats.astype(compute_dtype)
    cls = cls.astype(jnp.int32)
    w1 = params["w1"].astype(compute_dtype)
    w2 = params["w2"].astype(compute_dtype)
    wh = params["wh"].astype(compute_dtype)                           # (h_out, 128)
    b1, b2, bh = params["b1"], params["b2"], params["bh"]             # stay f32
    # Per-head views for the cls-selected matmul (picked by index_map).
    wh3 = wh.reshape(num_classes, out_size, head_in)
    bh3 = bh.reshape(num_classes, out_size, 1)

    const_spec = lambda arr: pl.BlockSpec(arr.shape, lambda b, n, cls_ref: (0, 0))

    out_all, selected = pl.pallas_call(
        _mlp_head_kernel,
        out_shape=(jax.ShapeDtypeStruct((B, h_out, N), out_dtype),
                   jax.ShapeDtypeStruct((B, out_size, N), out_dtype)),
        grid_spec=pltpu.PrefetchScalarGridSpec(
            num_scalar_prefetch=1,                     # cls -> SMEM, drives index_maps
            grid=(B, N // tile_n),
            in_specs=[
                # batch dim squeezed out -> kernel sees clean 2-D (C, tile_n).
                # TODO(synk): if a profile shows exposed input DMA at large tile_n,
                # add pipeline_mode=pl.Buffered(3) here.
                pl.BlockSpec((None, c_in, tile_n), lambda b, n, cls_ref: (b, 0, n)),
                const_spec(w1), const_spec(b1),
                const_spec(w2), const_spec(b2),
                const_spec(wh), const_spec(bh),
                # Selected-head weights: block chosen per batch element by cls.
                pl.BlockSpec((None, out_size, head_in),
                             lambda b, n, cls_ref: (cls_ref[b], 0, 0)),
                pl.BlockSpec((None, out_size, 1),
                             lambda b, n, cls_ref: (cls_ref[b], 0, 0)),
            ],
            out_specs=[
                pl.BlockSpec((None, h_out, tile_n), lambda b, n, cls_ref: (b, 0, n)),
                pl.BlockSpec((None, out_size, tile_n), lambda b, n, cls_ref: (b, 0, n)),
            ],
        ),
        compiler_params=pltpu.CompilerParams(
            # B and N-tiles are independent -> shardable across v7x's two TCs.
            dimension_semantics=("parallel", "parallel")),
    )(cls, x, w1, b1, w2, b2, wh, bh, wh3, bh3)

    # (B, num_classes*out_size, N) -> (B, num_classes, out_size, N): pure reshape
    # (dim split in row-major layout, no transpose pass over HBM).
    all_logits = out_all.reshape(B, num_classes, out_size, N)
    return selected, all_logits


def _reference_forward(params, points_feats, cls, num_classes, out_size,
                       compute_dtype=jnp.bfloat16):
    """Plain-JAX mirror of the kernel math for a correctness check."""
    x = points_feats.astype(compute_dtype)
    w1 = params["w1"].astype(compute_dtype)
    w2 = params["w2"].astype(compute_dtype)
    wh = params["wh"].astype(compute_dtype)

    def one_batch(xb):                                        # (c_in, N)
        h1 = jnp.dot(w1, xb, preferred_element_type=jnp.float32) + params["b1"]
        h1 = jnp.maximum(h1, 0.0)
        h2 = jnp.dot(w2, h1.astype(compute_dtype),
                     preferred_element_type=jnp.float32) + params["b2"]
        h2 = jnp.maximum(h2, 0.0)
        cat = jnp.concatenate([h2.astype(compute_dtype), xb], axis=0)
        return jnp.dot(wh, cat, preferred_element_type=jnp.float32) + params["bh"]

    out = jax.vmap(one_batch)(x)                              # (B, h_out, N) f32
    B, _, N = points_feats.shape
    all_logits = out.reshape(B, num_classes, out_size, N)
    selected = all_logits[jnp.arange(B), cls]
    return selected, all_logits


if __name__ == "__main__":
    # Small shapes consistent with the module defaults.
    num_classes = 4          # -> parallel heads
    num_parts = 5            # -> out_size = num_parts + 1 = 6
    in_size = 64
    feat_dim = 64
    out_size = num_parts + 1

    B, N = 2, 256

    key = jax.random.PRNGKey(0)
    k_feat, k_cls, k_par = jax.random.split(key, 3)

    points_feats = jax.random.normal(k_feat, (B, in_size, N), jnp.float32)
    cls = jax.random.randint(k_cls, (B,), 0, num_classes)

    params = init_params(k_par, in_size, feat_dim, out_size, num_classes)

    selected, all_logits = mlp_classifier_forward(
        params, points_feats, cls, num_classes, out_size)
    selected = jax.block_until_ready(selected)
    all_logits = jax.block_until_ready(all_logits)

    assert selected.shape == (B, out_size, N)
    assert all_logits.shape == (B, num_classes, out_size, N)
    assert bool(jnp.all(jnp.isfinite(selected.astype(jnp.float32))))
    assert bool(jnp.all(jnp.isfinite(all_logits.astype(jnp.float32))))

    ref_sel, ref_all = _reference_forward(
        params, points_feats, cls, num_classes, out_size)
    ref_sel = jax.block_until_ready(ref_sel)
    ref_all = jax.block_until_ready(ref_all)

    # Kernel outputs are bf16 (f32 accumulation inside) -> compare with a
    # bf16-appropriate tolerance against the f32-accumulated mirror.
    assert bool(jnp.allclose(all_logits.astype(jnp.float32), ref_all,
                             atol=2e-2, rtol=2e-2)), "all_logits mismatch vs. reference"
    assert bool(jnp.allclose(selected.astype(jnp.float32), ref_sel,
                             atol=2e-2, rtol=2e-2)), "selected logits mismatch vs. reference"

    print("KERNEL_OK")
</pallas_src>

<mosaic_0001>
module attributes {stable_mosaic.version = 11 : i64} {
  func.func @_mlp_head_kernel(%arg0: i32, %arg1: i32, %arg2: memref<2xi32, #tpu.memory_space<smem>>, %arg3: memref<1x64x256xbf16, #tpu.memory_space<vmem>>, %arg4: memref<64x64xbf16, #tpu.memory_space<vmem>>, %arg5: memref<64x1xf32, #tpu.memory_space<vmem>>, %arg6: memref<64x64xbf16, #tpu.memory_space<vmem>>, %arg7: memref<64x1xf32, #tpu.memory_space<vmem>>, %arg8: memref<24x128xbf16, #tpu.memory_space<vmem>>, %arg9: memref<24x1xf32, #tpu.memory_space<vmem>>, %arg10: memref<1x6x128xbf16, #tpu.memory_space<vmem>>, %arg11: memref<1x6x1xf32, #tpu.memory_space<vmem>>, %arg12: memref<1x24x256xbf16, #tpu.memory_space<vmem>>, %arg13: memref<1x6x256xbf16, #tpu.memory_space<vmem>>) attributes {dimension_semantics = [#tpu.dimension_semantics<parallel>, #tpu.dimension_semantics<parallel>], iteration_bounds = array<i64: 2, 1>, scalar_prefetch = 1 : i64, scratch_operands = 0 : i64, tpu.core_type = #tpu.core_type<tc>, window_params = [{transform_indices = @transform_0, window_bounds = array<i64: 1, 64, 256>}, {pipeline_mode = #tpu.pipeline_mode<synchronous>, transform_indices = @transform_1, window_bounds = array<i64: 64, 64>}, {pipeline_mode = #tpu.pipeline_mode<synchronous>, transform_indices = @transform_2, window_bounds = array<i64: 64, 1>}, {pipeline_mode = #tpu.pipeline_mode<synchronous>, transform_indices = @transform_3, window_bounds = array<i64: 64, 64>}, {pipeline_mode = #tpu.pipeline_mode<synchronous>, transform_indices = @transform_4, window_bounds = array<i64: 64, 1>}, {pipeline_mode = #tpu.pipeline_mode<synchronous>, transform_indices = @transform_5, window_bounds = array<i64: 24, 128>}, {pipeline_mode = #tpu.pipeline_mode<synchronous>, transform_indices = @transform_6, window_bounds = array<i64: 24, 1>}, {transform_indices = @transform_7, window_bounds = array<i64: 1, 6, 128>}, {transform_indices = @transform_8, window_bounds = array<i64: 1, 6, 1>}, {transform_indices = @transform_9, window_bounds = array<i64: 1, 24, 256>}, {transform_indices = @transform_10, window_bounds = array<i64: 1, 6, 256>}]} {
    %c0 = arith.constant 0 : index
    %c0_0 = arith.constant 0 : index
    %c0_1 = arith.constant 0 : index
    %0 = vector.load %arg3[%c0, %c0_0, %c0_1] : memref<1x64x256xbf16, #tpu.memory_space<vmem>>, vector<1x64x256xbf16>
    %1 = vector.shape_cast %0 : vector<1x64x256xbf16> to vector<64x256xbf16>
    %c0_2 = arith.constant 0 : index
    %c0_3 = arith.constant 0 : index
    %2 = vector.load %arg4[%c0_2, %c0_3] : memref<64x64xbf16, #tpu.memory_space<vmem>>, vector<64x64xbf16>
    %cst = arith.constant dense<0.000000e+00> : vector<64x256xf32>
    %3 = tpu.matmul %2, %1, %cst {dimension_numbers = #tpu.dot_dimension_numbers<[1], [0], [0], [1], [0, 0, 1, 1], [], []>} : vector<64x64xbf16>, vector<64x256xbf16>, vector<64x256xf32> -> vector<64x256xf32>
    %c0_4 = arith.constant 0 : index
    %c0_5 = arith.constant 0 : index
    %4 = vector.load %arg5[%c0_4, %c0_5] : memref<64x1xf32, #tpu.memory_space<vmem>>, vector<64x1xf32>
    %5 = vector.broadcast %4 : vector<64x1xf32> to vector<64x256xf32>
    %6 = arith.addf %3, %5 : vector<64x256xf32>
    %cst_6 = arith.constant 0.000000e+00 : f32
    %7 = vector.broadcast %cst_6 : f32 to vector<64x256xf32>
    %8 = arith.maximumf %6, %7 : vector<64x256xf32>
    %c0_7 = arith.constant 0 : index
    %c0_8 = arith.constant 0 : index
    %9 = vector.load %arg6[%c0_7, %c0_8] : memref<64x64xbf16, #tpu.memory_space<vmem>>, vector<64x64xbf16>
    %10 = arith.truncf %8 : vector<64x256xf32> to vector<64x256xbf16>
    %cst_9 = arith.constant dense<0.000000e+00> : vector<64x256xf32>
    %11 = tpu.matmul %9, %10, %cst_9 {dimension_numbers = #tpu.dot_dimension_numbers<[1], [0], [0], [1], [0, 0, 1, 1], [], []>} : vector<64x64xbf16>, vector<64x256xbf16>, vector<64x256xf32> -> vector<64x256xf32>
    %c0_10 = arith.constant 0 : index
    %c0_11 = arith.constant 0 : index
    %12 = vector.load %arg7[%c0_10, %c0_11] : memref<64x1xf32, #tpu.memory_space<vmem>>, vector<64x1xf32>
    %13 = vector.broadcast %12 : vector<64x1xf32> to vector<64x256xf32>
    %14 = arith.addf %11, %13 : vector<64x256xf32>
    %cst_12 = arith.constant 0.000000e+00 : f32
    %15 = vector.broadcast %cst_12 : f32 to vector<64x256xf32>
    %16 = arith.maximumf %14, %15 : vector<64x256xf32>
    %17 = arith.truncf %16 : vector<64x256xf32> to vector<64x256xbf16>
    %18 = tpu.concatenate %17, %1 in 0 : vector<64x256xbf16>, vector<64x256xbf16> -> vector<128x256xbf16>
    %c0_13 = arith.constant 0 : index
    %c0_14 = arith.constant 0 : index
    %19 = vector.load %arg8[%c0_13, %c0_14] : memref<24x128xbf16, #tpu.memory_space<vmem>>, vector<24x128xbf16>
    %cst_15 = arith.constant dense<0.000000e+00> : vector<24x256xf32>
    %20 = tpu.matmul %19, %18, %cst_15 {dimension_numbers = #tpu.dot_dimension_numbers<[1], [0], [0], [1], [0, 0, 1, 1], [], []>} : vector<24x128xbf16>, vector<128x256xbf16>, vector<24x256xf32> -> vector<24x256xf32>
    %c0_16 = arith.constant 0 : index
    %c0_17 = arith.constant 0 : index
    %21 = vector.load %arg9[%c0_16, %c0_17] : memref<24x1xf32, #tpu.memory_space<vmem>>, vector<24x1xf32>
    %22 = vector.broadcast %21 : vector<24x1xf32> to vector<24x256xf32>
    %23 = arith.addf %20, %22 : vector<24x256xf32>
    %24 = arith.truncf %23 : vector<24x256xf32> to vector<24x256xbf16>
    %c0_18 = arith.constant 0 : index
    %c0_19 = arith.constant 0 : index
    %c0_20 = arith.constant 0 : index
    %25 = vector.load %arg12[%c0_18, %c0_19, %c0_20] : memref<1x24x256xbf16, #tpu.memory_space<vmem>>, vector<1x24x256xbf16>
    %26 = vector.shape_cast %25 : vector<1x24x256xbf16> to vector<24x256xbf16>
    %27 = vector.shape_cast %24 : vector<24x256xbf16> to vector<1x24x256xbf16>
    tpu.vector_store %arg12[%c0_18, %c0_19, %c0_20], %27 {strides = array<i32>} : memref<1x24x256xbf16, #tpu.memory_space<vmem>>, vector<1x24x256xbf16>,
    %c0_21 = arith.constant 0 : index
    %c0_22 = arith.constant 0 : index
    %c0_23 = arith.constant 0 : index
    %28 = vector.load %arg10[%c0_21, %c0_22, %c0_23] : memref<1x6x128xbf16, #tpu.memory_space<vmem>>, vector<1x6x128xbf16>
    %29 = vector.shape_cast %28 : vector<1x6x128xbf16> to vector<6x128xbf16>
    %cst_24 = arith.constant dense<0.000000e+00> : vector<6x256xf32>
    %30 = tpu.matmul %29, %18, %cst_24 {dimension_numbers = #tpu.dot_dimension_numbers<[1], [0], [0], [1], [0, 0, 1, 1], [], []>} : vector<6x128xbf16>, vector<128x256xbf16>, vector<6x256xf32> -> vector<6x256xf32>
    %c0_25 = arith.constant 0 : index
    %c0_26 = arith.constant 0 : index
    %c0_27 = arith.constant 0 : index
    %31 = vector.load %arg11[%c0_25, %c0_26, %c0_27] : memref<1x6x1xf32, #tpu.memory_space<vmem>>, vector<1x6x1xf32>
    %32 = vector.shape_cast %31 : vector<1x6x1xf32> to vector<6x1xf32>
    %33 = vector.broadcast %32 : vector<6x1xf32> to vector<6x256xf32>
    %34 = arith.addf %30, %33 : vector<6x256xf32>
    %35 = arith.truncf %34 : vector<6x256xf32> to vector<6x256xbf16>
    %c0_28 = arith.constant 0 : index
    %c0_29 = arith.constant 0 : index
    %c0_30 = arith.constant 0 : index
    %36 = vector.load %arg13[%c0_28, %c0_29, %c0_30] : memref<1x6x256xbf16, #tpu.memory_space<vmem>>, vector<1x6x256xbf16>
    %37 = vector.shape_cast %36 : vector<1x6x256xbf16> to vector<6x256xbf16>
    %38 = vector.shape_cast %35 : vector<6x256xbf16> to vector<1x6x256xbf16>
    tpu.vector_store %arg13[%c0_28, %c0_29, %c0_30], %38 {strides = array<i32>} : memref<1x6x256xbf16, #tpu.memory_space<vmem>>, vector<1x6x256xbf16>,
    return
  }
  func.func @transform_0(%arg0: i32, %arg1: i32, %arg2: memref<2xi32, #tpu.memory_space<smem>>) -> (i32, i32, i32) {
    %c0_i32 = arith.constant 0 : i32
    %c0_i32_0 = arith.constant 0 : i32
    return %arg0, %c0_i32, %arg1 : i32, i32, i32
  }
  func.func @transform_1(%arg0: i32, %arg1: i32, %arg2: memref<2xi32, #tpu.memory_space<smem>>) -> (i32, i32) {
    %c0_i32 = arith.constant 0 : i32
    %c0_i32_0 = arith.constant 0 : i32
    %c0_i32_1 = arith.constant 0 : i32
    return %c0_i32, %c0_i32_0 : i32, i32
  }
  func.func @transform_2(%arg0: i32, %arg1: i32, %arg2: memref<2xi32, #tpu.memory_space<smem>>) -> (i32, i32) {
    %c0_i32 = arith.constant 0 : i32
    %c0_i32_0 = arith.constant 0 : i32
    %c0_i32_1 = arith.constant 0 : i32
    return %c0_i32, %c0_i32_0 : i32, i32
  }
  func.func @transform_3(%arg0: i32, %arg1: i32, %arg2: memref<2xi32, #tpu.memory_space<smem>>) -> (i32, i32) {
    %c0_i32 = arith.constant 0 : i32
    %c0_i32_0 = arith.constant 0 : i32
    %c0_i32_1 = arith.constant 0 : i32
    return %c0_i32, %c0_i32_0 : i32, i32
  }
  func.func @transform_4(%arg0: i32, %arg1: i32, %arg2: memref<2xi32, #tpu.memory_space<smem>>) -> (i32, i32) {
    %c0_i32 = arith.constant 0 : i32
    %c0_i32_0 = arith.constant 0 : i32
    %c0_i32_1 = arith.constant 0 : i32
    return %c0_i32, %c0_i32_0 : i32, i32
  }
  func.func @transform_5(%arg0: i32, %arg1: i32, %arg2: memref<2xi32, #tpu.memory_space<smem>>) -> (i32, i32) {
    %c0_i32 = arith.constant 0 : i32
    %c0_i32_0 = arith.constant 0 : i32
    %c0_i32_1 = arith.constant 0 : i32
    return %c0_i32, %c0_i32_0 : i32, i32
  }
  func.func @transform_6(%arg0: i32, %arg1: i32, %arg2: memref<2xi32, #tpu.memory_space<smem>>) -> (i32, i32) {
    %c0_i32 = arith.constant 0 : i32
    %c0_i32_0 = arith.constant 0 : i32
    %c0_i32_1 = arith.constant 0 : i32
    return %c0_i32, %c0_i32_0 : i32, i32
  }
  func.func @transform_7(%arg0: i32, %arg1: i32, %arg2: memref<2xi32, #tpu.memory_space<smem>>) -> (i32, i32, i32) {
    %0 = arith.index_cast %arg0 : i32 to index
    %1 = memref.load %arg2[%0] : memref<2xi32, #tpu.memory_space<smem>>
    %c0_i32 = arith.constant 0 : i32
    %c0_i32_0 = arith.constant 0 : i32
    %c0_i32_1 = arith.constant 0 : i32
    return %1, %c0_i32, %c0_i32_0 : i32, i32, i32
  }
  func.func @transform_8(%arg0: i32, %arg1: i32, %arg2: memref<2xi32, #tpu.memory_space<smem>>) -> (i32, i32, i32) {
    %0 = arith.index_cast %arg0 : i32 to index
    %1 = memref.load %arg2[%0] : memref<2xi32, #tpu.memory_space<smem>>
    %c0_i32 = arith.constant 0 : i32
    %c0_i32_0 = arith.constant 0 : i32
    %c0_i32_1 = arith.constant 0 : i32
    return %1, %c0_i32, %c0_i32_0 : i32, i32, i32
  }
  func.func @transform_9(%arg0: i32, %arg1: i32, %arg2: memref<2xi32, #tpu.memory_space<smem>>) -> (i32, i32, i32) {
    %c0_i32 = arith.constant 0 : i32
    %c0_i32_0 = arith.constant 0 : i32
    return %arg0, %c0_i32, %arg1 : i32, i32, i32
  }
  func.func @transform_10(%arg0: i32, %arg1: i32, %arg2: memref<2xi32, #tpu.memory_space<smem>>) -> (i32, i32, i32) {
    %c0_i32 = arith.constant 0 : i32
    %c0_i32_0 = arith.constant 0 : i32
    return %arg0, %c0_i32, %arg1 : i32, i32, i32
  }
}

</mosaic_0001>

<llo_original>
// kernel: tpu_custom_call.1
$region0: #{tpu_custom_call.1}
  #allocation0 [shape = 'u32[]', space=smem, size = 0x4, offset = 0x4, fixed_abs, tag = 'smem constant byte address 0x4 - core index']
  #allocation1 [shape = 'u32[144,128]{1,0:T(1,128)}', space=vmem, size = 0x12000, scoped, tag = 'internal scratch']
  #allocation2 [shape = 's32[1]{0}', space=sflag, size = 0x4, scoped, tag = 'scoped memory for tpu_custom_call.1']
  #allocation3 [shape = 'u8[512]{0}', space=smem, size = 0x200, scoped, tag = 'prefetched SMEM operand 0']
  %s0 = inlined_call_operand.vmem [shape: s32[2], index: 0, kind: input, shape index: {}]
  %s1 = inlined_call_operand.vmem [shape: bf16[2,64,256], index: 1, kind: input, shape index: {}]
  %s2 = inlined_call_operand.vmem [shape: bf16[64,64], index: 2, kind: input, shape index: {}]
  %s3 = inlined_call_operand.vmem [shape: f32[64,1], index: 3, kind: input, shape index: {}]
  %s4 = inlined_call_operand.vmem [shape: bf16[64,64], index: 4, kind: input, shape index: {}]
  %s5 = inlined_call_operand.vmem [shape: f32[64,1], index: 5, kind: input, shape index: {}]
  %s6 = inlined_call_operand.vmem [shape: bf16[24,128], index: 6, kind: input, shape index: {}]
  %s7 = inlined_call_operand.vmem [shape: f32[24,1], index: 7, kind: input, shape index: {}]
  %s8 = inlined_call_operand.vmem [shape: bf16[4,6,128], index: 8, kind: input, shape index: {}]
  %s9 = inlined_call_operand.vmem [shape: f32[4,6,1], index: 9, kind: input, shape index: {}]
  %s10 = inlined_call_operand.hbm [shape: bf16[2,24,256], index: 10, kind: output, shape index: {0}]
  %s11 = inlined_call_operand.vmem [shape: bf16[2,6,256], index: 11, kind: output, shape index: {1}]
  %12 = xla_tuple %s10, %s11
  %s13 = sld [smem:[#allocation0]]
  $region77: #{tpu_custom_call.1} parent=0
    _
  %s15 = ssub.s32 1, %s13
  %s16 = scalar_select 0, %s15, %s13
  %s17 = sshll.u32 %s0, 4
  %s18 = int_to_ptr.vmem [resolvable:$true] %s17
  %20 = dma.vmem_to_smem %s18, 16, [#allocation3], [#allocation2]
  %21 = dma.done [#allocation2], 16
  %22 = sfence
  $region1: #{tpu_custom_call.1} parent=0
    #allocation4 [shape = 'u8[24576]{0}', space=vmem, size = 0x6000, scoped, tag = 'output window, operand 0']
    #allocation5 [shape = 's32[2]{0}', space=sflag, size = 0x8, scoped, tag = 'scoped memory for tpu_custom_call.1']
    %23 = vsyncpa [#allocation5], 0
    %s24 = scalar_lea.sflag [#allocation5], 1
    %25 = vsyncpa %s24, 0
    loop: start=0, step=1, limit=4
    $region2: #{tpu_custom_call.1} parent=1 // loop_pre_header
      _
    $region3: #{tpu_custom_call.1} parent=1 // loop_header
      %s27 = sphi 0, %s31
      %p28 = scmp.ge.s32.totalorder %s27, 4
      %s34 = sphi 0, %s46
      %s35 = sphi 0, %s42
      %s36 = sphi 0, %s34
      %s37 = sphi 0, %s35
      %s38 = sphi 0, %s36
      %s39 = sphi 0, %s37
      %s51 = sphi 0, %s53
      %s54 = sphi 0, %s51
      %s55 = sphi 0, %s54
      %s71 = sphi 0, %s55
      %s75 = sphi 0, %s75
      %s77 = sphi 0, %s75
      %s78 = sphi 0, %s77
      %s92 = sphi 0, %s78
      %s96 = sphi 0, %s96
      %s98 = sphi 0, %s96
      %s99 = sphi 0, %s98
      %s113 = sphi 0, %s99
      %s117 = sphi 0, %s117
      %s119 = sphi 0, %s117
      %s120 = sphi 0, %s119
      %s134 = sphi 0, %s120
      %s138 = sphi 0, %s138
      %s140 = sphi 0, %s138
      %s141 = sphi 0, %s140
      %s155 = sphi 0, %s141
      %s159 = sphi 0, %s159
      %s161 = sphi 0, %s159
      %s162 = sphi 0, %s161
      %s176 = sphi 0, %s162
      %s180 = sphi 0, %s180
      %s182 = sphi 0, %s180
      %s183 = sphi 0, %s182
      %s197 = sphi 0, %s183
      %s205 = sphi 0, %s207
      %s208 = sphi 0, %s205
      %s209 = sphi 0, %s208
      %s225 = sphi 0, %s209
      %s233 = sphi 0, %s235
      %s236 = sphi 0, %s233
      %s237 = sphi 0, %s236
      %s253 = sphi 0, %s237
      %s261 = sphi 0, %s263
      %s264 = sphi 0, %s261
      %s265 = sphi 0, %s264
      %s281 = sphi 0, %s265
      %s289 = sphi 0, %s291
      %s292 = sphi 0, %s289
      %s293 = sphi 0, %s292
      %s309 = sphi 0, %s293
    $region4: #{tpu_custom_call.1} parent=1 // loop_header_branch
      %30 = sbr.rel (%p28) target = $region8
    $region5: #{tpu_custom_call.1} parent=1 // loop_body
      %s32 = ssub.s32 %s27, 1
      %s33 = ssub.s32 %s27, 2
      %s40 = sadd.s32 1, %s35
      %p41 = scmp.ge.s32.totalorder %s40, 1
      %s42 = scalar_select %p41, 0, %s40
      %s43 = sadd.s32 1, %s34
      %s44 = scalar_select %p41, %s43, %s34
      %p45 = scmp.ge.s32.totalorder %s44, 2
      %s46 = scalar_select %p45, 0, %s44
      %s47 = ssub.s32 %s34, %s46
      %s48 = ssub.s32 %s35, %s42
      %s49 = sor.u32 %s47, %s48
      %p50 = scmp.eq.s32.totalorder %s49, 0
      %s52 = sadd.s32 %s51, 1
      %s53 = scalar_select %p50, %s51, %s52
      %p56 = pneg %p50
      %p57 = scmp.eq.s32.totalorder %s27, 1
      %p58 = por %p56, %p57
      %p59 = scmp.ne.s32.totalorder %s51, %s54
      %p60 = scmp.eq.s32.totalorder %s27, 0
      %p61 = por %p59, %p60
      %p62 = scmp.ne.s32.totalorder %s51, %s54
      %p63 = scmp.eq.s32.totalorder %s32, 1
      %p64 = por %p62, %p63
      %p65 = scmp.ne.s32.totalorder %s54, %s55
      %p66 = scmp.eq.s32.totalorder %s32, 0
      %p67 = por %p65, %p66
      %p68 = scmp.ne.s32.totalorder %s54, %s55
      %p69 = scmp.eq.s32.totalorder %s33, 1
      %p70 = por %p68, %p69
      %p72 = scmp.ne.s32.totalorder %s55, %s71
      %p73 = scmp.eq.s32.totalorder %s33, 0
      %p74 = por %p72, %p73
      %s76 = sadd.s32 %s75, 1
      %p79 = scmp.eq.s32.totalorder %s27, 1
      %p80 = scmp.ne.s32.totalorder %s75, %s77
      %p81 = scmp.eq.s32.totalorder %s27, 0
      %p82 = por %p80, %p81
      %p83 = scmp.ne.s32.totalorder %s75, %s77
      %p84 = scmp.eq.s32.totalorder %s32, 1
      %p85 = por %p83, %p84
      %p86 = scmp.ne.s32.totalorder %s77, %s78
      %p87 = scmp.eq.s32.totalorder %s32, 0
      %p88 = por %p86, %p87
      %p89 = scmp.ne.s32.totalorder %s77, %s78
      %p90 = scmp.eq.s32.totalorder %s33, 1
      %p91 = por %p89, %p90
      %p93 = scmp.ne.s32.totalorder %s78, %s92
      %p94 = scmp.eq.s32.totalorder %s33, 0
      %p95 = por %p93, %p94
      %s97 = sadd.s32 %s96, 1
      %p100 = scmp.eq.s32.totalorder %s27, 1
      %p101 = scmp.ne.s32.totalorder %s96, %s98
      %p102 = scmp.eq.s32.totalorder %s27, 0
      %p103 = por %p101, %p102
      %p104 = scmp.ne.s32.totalorder %s96, %s98
      %p105 = scmp.eq.s32.totalorder %s32, 1
      %p106 = por %p104, %p105
      %p107 = scmp.ne.s32.totalorder %s98, %s99
      %p108 = scmp.eq.s32.totalorder %s32, 0
      %p109 = por %p107, %p108
      %p110 = scmp.ne.s32.totalorder %s98, %s99
      %p111 = scmp.eq.s32.totalorder %s33, 1
      %p112 = por %p110, %p111
      %p114 = scmp.ne.s32.totalorder %s99, %s113
      %p115 = scmp.eq.s32.totalorder %s33, 0
      %p116 = por %p114, %p115
      %s118 = sadd.s32 %s117, 1
      %p121 = scmp.eq.s32.totalorder %s27, 1
      %p122 = scmp.ne.s32.totalorder %s117, %s119
      %p123 = scmp.eq.s32.totalorder %s27, 0
      %p124 = por %p122, %p123
      %p125 = scmp.ne.s32.totalorder %s117, %s119
      %p126 = scmp.eq.s32.totalorder %s32, 1
      %p127 = por %p125, %p126
      %p128 = scmp.ne.s32.totalorder %s119, %s120
      %p129 = scmp.eq.s32.totalorder %s32, 0
      %p130 = por %p128, %p129
      %p131 = scmp.ne.s32.totalorder %s119, %s120
      %p132 = scmp.eq.s32.totalorder %s33, 1
      %p133 = por %p131, %p132
      %p135 = scmp.ne.s32.totalorder %s120, %s134
      %p136 = scmp.eq.s32.totalorder %s33, 0
      %p137 = por %p135, %p136
      %s139 = sadd.s32 %s138, 1
      %p142 = scmp.eq.s32.totalorder %s27, 1
      %p143 = scmp.ne.s32.totalorder %s138, %s140
      %p144 = scmp.eq.s32.totalorder %s27, 0
      %p145 = por %p143, %p144
      %p146 = scmp.ne.s32.totalorder %s138, %s140
      %p147 = scmp.eq.s32.totalorder %s32, 1
      %p148 = por %p146, %p147
      %p149 = scmp.ne.s32.totalorder %s140, %s141
      %p150 = scmp.eq.s32.totalorder %s32, 0
      %p151 = por %p149, %p150
      %p152 = scmp.ne.s32.totalorder %s140, %s141
      %p153 = scmp.eq.s32.totalorder %s33, 1
      %p154 = por %p152, %p153
      %p156 = scmp.ne.s32.totalorder %s141, %s155
      %p157 = scmp.eq.s32.totalorder %s33, 0
      %p158 = por %p156, %p157
      %s160 = sadd.s32 %s159, 1
      %p163 = scmp.eq.s32.totalorder %s27, 1
      %p164 = scmp.ne.s32.totalorder %s159, %s161
      %p165 = scmp.eq.s32.totalorder %s27, 0
      %p166 = por %p164, %p165
      %p167 = scmp.ne.s32.totalorder %s159, %s161
      %p168 = scmp.eq.s32.totalorder %s32, 1
      %p169 = por %p167, %p168
      %p170 = scmp.ne.s32.totalorder %s161, %s162
      %p171 = scmp.eq.s32.totalorder %s32, 0
      %p172 = por %p170, %p171
      %p173 = scmp.ne.s32.totalorder %s161, %s162
      %p174 = scmp.eq.s32.totalorder %s33, 1
      %p175 = por %p173, %p174
      %p177 = scmp.ne.s32.totalorder %s162, %s176
      %p178 = scmp.eq.s32.totalorder %s33, 0
      %p179 = por %p177, %p178
      %s181 = sadd.s32 %s180, 1
      %p184 = scmp.eq.s32.totalorder %s27, 1
      %p185 = scmp.ne.s32.totalorder %s180, %s182
      %p186 = scmp.eq.s32.totalorder %s27, 0
      %p187 = por %p185, %p186
      %p188 = scmp.ne.s32.totalorder %s180, %s182
      %p189 = scmp.eq.s32.totalorder %s32, 1
      %p190 = por %p188, %p189
      %p191 = scmp.ne.s32.totalorder %s182, %s183
      %p192 = scmp.eq.s32.totalorder %s32, 0
      %p193 = por %p191, %p192
      %p194 = scmp.ne.s32.totalorder %s182, %s183
      %p195 = scmp.eq.s32.totalorder %s33, 1
      %p196 = por %p194, %p195
      %p198 = scmp.ne.s32.totalorder %s183, %s197
      %p199 = scmp.eq.s32.totalorder %s33, 0
      %p200 = por %p198, %p199
      %s201 = sld [smem:[#allocation3 + %s34]]
      %s202 = sld [smem:[#allocation3 + %s46]]
      %s203 = ssub.s32 %s201, %s202
      %p204 = scmp.eq.s32.totalorder %s203, 0
      %s206 = sadd.s32 %s205, 1
      %s207 = scalar_select %p204, %s205, %s206
      %p210 = pneg %p204
      %p211 = scmp.eq.s32.totalorder %s27, 1
      %p212 = por %p210, %p211
      %p213 = scmp.ne.s32.totalorder %s205, %s208
      %p214 = scmp.eq.s32.totalorder %s27, 0
      %p215 = por %p213, %p214
      %p216 = scmp.ne.s32.totalorder %s205, %s208
      %p217 = scmp.eq.s32.totalorder %s32, 1
      %p218 = por %p216, %p217
      %p219 = scmp.ne.s32.totalorder %s208, %s209
      %p220 = scmp.eq.s32.totalorder %s32, 0
      %p221 = por %p219, %p220
      %p222 = scmp.ne.s32.totalorder %s208, %s209
      %p223 = scmp.eq.s32.totalorder %s33, 1
      %p224 = por %p222, %p223
      %p226 = scmp.ne.s32.totalorder %s209, %s225
      %p227 = scmp.eq.s32.totalorder %s33, 0
      %p228 = por %p226, %p227
      %s229 = sld [smem:[#allocation3 + %s34]]
      %s230 = sld [smem:[#allocation3 + %s46]]
      %s231 = ssub.s32 %s229, %s230
      %p232 = scmp.eq.s32.totalorder %s231, 0
      %s234 = sadd.s32 %s233, 1
      %s235 = scalar_select %p232, %s233, %s234
      %p238 = pneg %p232
      %p239 = scmp.eq.s32.totalorder %s27, 1
      %p240 = por %p238, %p239
      %p241 = scmp.ne.s32.totalorder %s233, %s236
      %p242 = scmp.eq.s32.totalorder %s27, 0
      %p243 = por %p241, %p242
      %p244 = scmp.ne.s32.totalorder %s233, %s236
      %p245 = scmp.eq.s32.totalorder %s32, 1
      %p246 = por %p244, %p245
      %p247 = scmp.ne.s32.totalorder %s236, %s237
      %p248 = scmp.eq.s32.totalorder %s32, 0
      %p249 = por %p247, %p248
      %p250 = scmp.ne.s32.totalorder %s236, %s237
      %p251 = scmp.eq.s32.totalorder %s33, 1
      %p252 = por %p250, %p251
      %p254 = scmp.ne.s32.totalorder %s237, %s253
      %p255 = scmp.eq.s32.totalorder %s33, 0
      %p256 = por %p254, %p255
      %s257 = ssub.s32 %s34, %s46
      %s258 = ssub.s32 %s35, %s42
      %s259 = sor.u32 %s257, %s258
      %p260 = scmp.eq.s32.totalorder %s259, 0
      %s262 = sadd.s32 %s261, 1
      %s263 = scalar_select %p260, %s261, %s262
      %p266 = pneg %p260
      %p267 = scmp.eq.s32.totalorder %s27, 1
      %p268 = por %p266, %p267
      %p269 = scmp.ne.s32.totalorder %s261, %s264
      %p270 = scmp.eq.s32.totalorder %s27, 0
      %p271 = por %p269, %p270
      %p272 = scmp.ne.s32.totalorder %s261, %s264
      %p273 = scmp.eq.s32.totalorder %s32, 1
      %p274 = por %p272, %p273
      %p275 = scmp.ne.s32.totalorder %s264, %s265
      %p276 = scmp.eq.s32.totalorder %s32, 0
      %p277 = por %p275, %p276
      %p278 = scmp.ne.s32.totalorder %s264, %s265
      %p279 = scmp.eq.s32.totalorder %s33, 1
      %p280 = por %p278, %p279
      %p282 = scmp.ne.s32.totalorder %s265, %s281
      %p283 = scmp.eq.s32.totalorder %s33, 0
      %p284 = por %p282, %p283
      %s285 = ssub.s32 %s34, %s46
      %s286 = ssub.s32 %s35, %s42
      %s287 = sor.u32 %s285, %s286
      %p288 = scmp.eq.s32.totalorder %s287, 0
      %s290 = sadd.s32 %s289, 1
      %s291 = scalar_select %p288, %s289, %s290
      %p294 = pneg %p288
      %p295 = scmp.eq.s32.totalorder %s27, 1
      %p296 = por %p294, %p295
      %p297 = scmp.ne.s32.totalorder %s289, %s292
      %p298 = scmp.eq.s32.totalorder %s27, 0
      %p299 = por %p297, %p298
      %p300 = scmp.ne.s32.totalorder %s289, %s292
      %p301 = scmp.eq.s32.totalorder %s32, 1
      %p302 = por %p300, %p301
      %p303 = scmp.ne.s32.totalorder %s292, %s293
      %p304 = scmp.eq.s32.totalorder %s32, 0
      %p305 = por %p303, %p304
      %p306 = scmp.ne.s32.totalorder %s292, %s293
      %p307 = scmp.eq.s32.totalorder %s33, 1
      %p308 = por %p306, %p307
      %p310 = scmp.ne.s32.totalorder %s293, %s309
      %p311 = scmp.eq.s32.totalorder %s33, 0
      %p312 = por %p310, %p311
      %p313 = scmp.le.s32.totalorder 1, %s27
      %p314 = scmp.lt.s32.totalorder %s27, 3
      %p315 = pnand %p313, %p314
      %p316 = pneg %p315
      // Predicated region
      $region9: #{tpu_custom_call.1} parent=5 // pred_check
        _
      $region10: #{tpu_custom_call.1} parent=5 // pred_check_branch
        %318 = sbr.rel (%p315) target = $region12
      $region11: #{tpu_custom_call.1} parent=5 // pred_region
        %s319 = ssub.s32 %s27, 1
        // Predicated region
        $region13: #{tpu_custom_call.1} parent=11 // pred_check
          %p320 = pneg %p88
        $region14: #{tpu_custom_call.1} parent=11 // pred_check_branch
          %322 = sbr.rel (%p320) target = $region16
        $region15: #{tpu_custom_call.1} parent=11 // pred_region
          _
        $region16: #{tpu_custom_call.1} parent=11 // pred_fallthru
          _
        // Predicated region
        $region17: #{tpu_custom_call.1} parent=11 // pred_check
          %p323 = pneg %p109
        $region18: #{tpu_custom_call.1} parent=11 // pred_check_branch
          %325 = sbr.rel (%p323) target = $region20
        $region19: #{tpu_custom_call.1} parent=11 // pred_region
          _
        $region20: #{tpu_custom_call.1} parent=11 // pred_fallthru
          _
        // Predicated region
        $region21: #{tpu_custom_call.1} parent=11 // pred_check
          %p326 = pneg %p130
        $region22: #{tpu_custom_call.1} parent=11 // pred_check_branch
          %328 = sbr.rel (%p326) target = $region24
        $region23: #{tpu_custom_call.1} parent=11 // pred_region
          _
        $region24: #{tpu_custom_call.1} parent=11 // pred_fallthru
          _
        // Predicated region
        $region25: #{tpu_custom_call.1} parent=11 // pred_check
          %p329 = pneg %p151
        $region26: #{tpu_custom_call.1} parent=11 // pred_check_branch
          %331 = sbr.rel (%p329) target = $region28
        $region27: #{tpu_custom_call.1} parent=11 // pred_region
          _
        $region28: #{tpu_custom_call.1} parent=11 // pred_fallthru
          _
        // Predicated region
        $region29: #{tpu_custom_call.1} parent=11 // pred_check
          %p332 = pneg %p172
        $region30: #{tpu_custom_call.1} parent=11 // pred_check_branch
          %334 = sbr.rel (%p332) target = $region32
        $region31: #{tpu_custom_call.1} parent=11 // pred_region
          _
        $region32: #{tpu_custom_call.1} parent=11 // pred_fallthru
          _
        // Predicated region
        $region33: #{tpu_custom_call.1} parent=11 // pred_check
          %p335 = pneg %p193
        $region34: #{tpu_custom_call.1} parent=11 // pred_check_branch
          %337 = sbr.rel (%p335) target = $region36
        $region35: #{tpu_custom_call.1} parent=11 // pred_region
          _
        $region36: #{tpu_custom_call.1} parent=11 // pred_fallthru
          _
      $region12: #{tpu_custom_call.1} parent=5 // pred_fallthru
        _
      %p338 = scmp.lt.s32.totalorder %s27, 2
      // Predicated region
      $region37: #{tpu_custom_call.1} parent=5 // pred_check
        %p339 = pneg %p338
      $region38: #{tpu_custom_call.1} parent=5 // pred_check_branch
        %341 = sbr.rel (%p339) target = $region40
      $region39: #{tpu_custom_call.1} parent=5 // pred_region
        // Predicated region
        $region41: #{tpu_custom_call.1} parent=39 // pred_check
          %p342 = pneg %p61
        $region42: #{tpu_custom_call.1} parent=39 // pred_check_branch
          %344 = sbr.rel (%p342) target = $region44
        $region43: #{tpu_custom_call.1} parent=39 // pred_region
          %s345 = smul.u32 2, %s35
          %p346 = scmp.lt.s32.totalorder %s34, 1
          %s347 = scalar_select %p346, %s34, 1
          %p348 = scmp.lt.s32.totalorder %s345, 1
          %s349 = scalar_select %p348, %s345, 1
          %s350 = smul.addr %s347, 16
          %s351 = sadd.s32 %s349, %s350
          %s352 = smul.addr %s351, 4
          %s353 = scalar_lea.vmem %s1, %s352
          %s354 = smul.u32 2, %s35
        $region44: #{tpu_custom_call.1} parent=39 // pred_fallthru
          _
        // Predicated region
        $region45: #{tpu_custom_call.1} parent=39 // pred_check
          %p355 = pneg %p215
        $region46: #{tpu_custom_call.1} parent=39 // pred_check_branch
          %357 = sbr.rel (%p355) target = $region48
        $region47: #{tpu_custom_call.1} parent=39 // pred_region
          %s358 = sld [smem:[#allocation3 + %s34]]
          %p359 = scmp.lt.s32.totalorder %s358, 3
          %s360 = scalar_select %p359, %s358, 3
          %s361 = smul.addr %s360, 4
          %s362 = scalar_lea.vmem %s8, %s361
          %s363 = sld [smem:[#allocation3 + %s34]]
        $region48: #{tpu_custom_call.1} parent=39 // pred_fallthru
          _
        // Predicated region
        $region49: #{tpu_custom_call.1} parent=39 // pred_check
          %p364 = pneg %p243
        $region50: #{tpu_custom_call.1} parent=39 // pred_check_branch
          %366 = sbr.rel (%p364) target = $region52
        $region51: #{tpu_custom_call.1} parent=39 // pred_region
          %s367 = sld [smem:[#allocation3 + %s34]]
          %p368 = scmp.lt.s32.totalorder %s367, 3
          %s369 = scalar_select %p368, %s367, 3
          %s370 = smul.addr %s369, 8
          %s371 = scalar_lea.vmem %s9, %s370
          %s372 = sld [smem:[#allocation3 + %s34]]
        $region52: #{tpu_custom_call.1} parent=39 // pred_fallthru
          _
      $region40: #{tpu_custom_call.1} parent=5 // pred_fallthru
        _
      %p373 = scmp.le.s32.totalorder 1, %s27
      %p374 = scmp.lt.s32.totalorder %s27, 3
      %p375 = pnand %p373, %p374
      %p376 = pneg %p375
      // Predicated region
      $region53: #{tpu_custom_call.1} parent=5 // pred_check
        _
      $region54: #{tpu_custom_call.1} parent=5 // pred_check_branch
        %378 = sbr.rel (%p375) target = $region56
      $region55: #{tpu_custom_call.1} parent=5 // pred_region
        %s379 = ssub.s32 %s27, 1
        %s380 = smul.u32 2, %s37
        %p381 = scmp.lt.s32.totalorder %s36, 1
        %s382 = scalar_select %p381, %s36, 1
        %p383 = scmp.lt.s32.totalorder %s380, 1
        %s384 = scalar_select %p383, %s380, 1
        %s385 = smul.addr %s382, 16
        %s386 = sadd.s32 %s384, %s385
        %s387 = smul.addr %s386, 4
        %s388 = scalar_lea.vmem %s1, %s387
        %p389 = pneg %p67
        %p390 = pneg %p64
        %p391 = pneg %p88
        %p392 = pneg %p85
        %p393 = pneg %p109
        %p394 = pneg %p106
        %p395 = pneg %p130
        %p396 = pneg %p127
        %p397 = pneg %p151
        %p398 = pneg %p148
        %p399 = pneg %p172
        %p400 = pneg %p169
        %p401 = pneg %p193
        %p402 = pneg %p190
        %s403 = sld [smem:[#allocation3 + %s36]]
        %p404 = scmp.lt.s32.totalorder %s403, 3
        %s405 = scalar_select %p404, %s403, 3
        %s406 = smul.addr %s405, 4
        %s407 = scalar_lea.vmem %s8, %s406
        %p408 = pneg %p221
        %p409 = pneg %p218
        %s410 = sld [smem:[#allocation3 + %s36]]
        %p411 = scmp.lt.s32.totalorder %s410, 3
        %s412 = scalar_select %p411, %s410, 3
        %s413 = smul.addr %s412, 8
        %s414 = scalar_lea.vmem %s9, %s413
        %p415 = pneg %p249
        %p416 = pneg %p246
        %p417 = pneg %p277
        %p418 = pneg %p274
        %s419 = sand.u32 %s264, 1
        %s420 = scalar_lea.sflag [#allocation5], %s419
        %s421 = sand.u32 %s264, 1
        %s422 = smul.addr %s421, 24
        %s423 = scalar_lea.vmem [#allocation4], %s422
        %p424 = pneg %p305
        %p425 = pneg %p302
        %s426 = smul.u32 2, %s37
        %p427 = scmp.lt.s32.totalorder %s36, 1
        %s428 = scalar_select %p427, %s36, 1
        %p429 = scmp.lt.s32.totalorder %s426, 1
        %s430 = scalar_select %p429, %s426, 1
        %s431 = smul.addr %s428, 2
        %s432 = sadd.s32 %s430, %s431
        %s433 = smul.addr %s432, 4
        %s434 = scalar_lea.vmem %s11, %s433
        %s435 = smul.u32 2, %s37
        %p436 = scmp.lt.s32.totalorder %s36, 1
        %s437 = scalar_select %p436, %s36, 1
        %p438 = scmp.lt.s32.totalorder %s435, 1
        %s439 = scalar_select %p438, %s435, 1
        %s440 = smul.addr %s437, 16
        %s441 = sadd.s32 %s439, %s440
        %s442 = smul.addr %s441, 4
        %s443 = scalar_lea.vmem %s1, %s442
        %s444 = smul.u32 2, %s37
        %s445 = sld [smem:[#allocation3 + %s36]]
        %p446 = scmp.lt.s32.totalorder %s445, 3
        %s447 = scalar_select %p446, %s445, 3
        %s448 = smul.addr %s447, 4
        %s449 = scalar_lea.vmem %s8, %s448
        %s450 = sld [smem:[#allocation3 + %s36]]
        %s451 = sld [smem:[#allocation3 + %s36]]
        %p452 = scmp.lt.s32.totalorder %s451, 3
        %s453 = scalar_select %p452, %s451, 3
        %s454 = smul.addr %s453, 8
        %s455 = scalar_lea.vmem %s9, %s454
        %s456 = sld [smem:[#allocation3 + %s36]]
        %s457 = smul.u32 2, %s37
        %s458 = smul.u32 2, %s37
        %p459 = scmp.lt.s32.totalorder %s36, 1
        %s460 = scalar_select %p459, %s36, 1
        %p461 = scmp.lt.s32.totalorder %s458, 1
        %s462 = scalar_select %p461, %s458, 1
        %s463 = smul.addr %s460, 2
        %s464 = sadd.s32 %s462, %s463
        %s465 = smul.addr %s464, 4
        %s466 = scalar_lea.vmem %s11, %s465
        %s467 = smul.u32 2, %s37
        %v469 = vld [vmem:[%s443] sm:$0xff]
        %v470 = vld [vmem:[%s443 + $0x8] sm:$0xff]
        %v471 = vld [vmem:[%s443 + $0x10] sm:$0xff]
        %v472 = vld [vmem:[%s443 + $0x18] sm:$0xff]
        %v473 = vld [vmem:[%s443 + $0x20] sm:$0xff]
        %v474 = vld [vmem:[%s443 + $0x28] sm:$0xff]
        %v475 = vld [vmem:[%s443 + $0x30] sm:$0xff]
        %v476 = vld [vmem:[%s443 + $0x38] sm:$0xff]
        %v477 = vld [vmem:[%s2] sm:$0xf]
        %v478 = vld [vmem:[%s2 + $0x4] sm:$0xf]
        %v479 = vld [vmem:[%s2 + $0x8] sm:$0xf]
        %v480 = vld [vmem:[%s2 + $0xc] sm:$0xf]
        %v481 = vld [vmem:[%s2 + $0x10] sm:$0xf]
        %v482 = vld [vmem:[%s2 + $0x14] sm:$0xf]
        %v483 = vld [vmem:[%s2 + $0x18] sm:$0xf]
        %v484 = vld [vmem:[%s2 + $0x1c] sm:$0xf]
        %v485 = vld [vmem:[%s3] sm:$0xff]
        %v486 = vld [vmem:[%s3 + $0x8] sm:$0xff]
        %v487 = vld [vmem:[%s3 + $0x10] sm:$0xff]
        %v488 = vld [vmem:[%s3 + $0x18] sm:$0xff]
        %v489 = vld [vmem:[%s3 + $0x20] sm:$0xff]
        %v490 = vld [vmem:[%s3 + $0x28] sm:$0xff]
        %v491 = vld [vmem:[%s3 + $0x30] sm:$0xff]
        %v492 = vld [vmem:[%s3 + $0x38] sm:$0xff]
        %494 = vset.pattern.permute.xlu0 0
        %495 = vperm.xlu0 %494, %v485
        %v496 = vpop.permute.xlu0 %495
        %499 = vset.pattern.permute.xlu0 0
        %500 = vperm.xlu0 %499, %v486
        %v501 = vpop.permute.xlu0 %500
        %504 = vset.pattern.permute.xlu0 0
        %505 = vperm.xlu0 %504, %v487
        %v506 = vpop.permute.xlu0 %505
        %509 = vset.pattern.permute.xlu0 0
        %510 = vperm.xlu0 %509, %v488
        %v511 = vpop.permute.xlu0 %510
        %514 = vset.pattern.permute.xlu0 0
        %515 = vperm.xlu0 %514, %v489
        %v516 = vpop.permute.xlu0 %515
        %519 = vset.pattern.permute.xlu0 0
        %520 = vperm.xlu0 %519, %v490
        %v521 = vpop.permute.xlu0 %520
        %524 = vset.pattern.permute.xlu0 0
        %525 = vperm.xlu0 %524, %v491
        %v526 = vpop.permute.xlu0 %525
        %529 = vset.pattern.permute.xlu0 0
        %530 = vperm.xlu0 %529, %v492
        %v531 = vpop.permute.xlu0 %530
        %v541 = vunpack.c.l.b16 %v477
        %v542 = vunpack.c.l.b16 %v478
        %v543 = vunpack.c.l.b16 %v479
        %v544 = vunpack.c.l.b16 %v480
        %v545 = vunpack.c.l.b16 %v481
        %v546 = vunpack.c.l.b16 %v482
        %v547 = vunpack.c.l.b16 %v483
        %v548 = vunpack.c.l.b16 %v484
        %v549 = vpack.c.b16 %v542, %v541
        %v550 = vpack.c.b16 %v544, %v543
        %v551 = vpack.c.b16 %v546, %v545
        %v552 = vpack.c.b16 %v548, %v547
        %v561 = vunpack.c.l.b16 %v469
        %v562 = vunpack.c.h.b16 %v469
        %v563 = vunpack.c.l.b16 %v470
        %v564 = vunpack.c.h.b16 %v470
        %v565 = vunpack.c.l.b16 %v471
        %v566 = vunpack.c.h.b16 %v471
        %v567 = vunpack.c.l.b16 %v472
        %v568 = vunpack.c.h.b16 %v472
        %v569 = vunpack.c.l.b16 %v473
        %v570 = vunpack.c.h.b16 %v473
        %v571 = vunpack.c.l.b16 %v474
        %v572 = vunpack.c.h.b16 %v474
        %v573 = vunpack.c.l.b16 %v475
        %v574 = vunpack.c.h.b16 %v475
        %v575 = vunpack.c.l.b16 %v476
        %v576 = vunpack.c.h.b16 %v476
        %v577 = vpack.c.b16 %v563, %v561
        %v578 = vpack.c.b16 %v564, %v562
        %v579 = vpack.c.b16 %v567, %v565
        %v580 = vpack.c.b16 %v568, %v566
        %v581 = vpack.c.b16 %v571, %v569
        %v582 = vpack.c.b16 %v572, %v570
        %v583 = vpack.c.b16 %v575, %v573
        %v584 = vpack.c.b16 %v576, %v574
        %vm593 = vcmask 523264
        %v595 = vsel %vm593, %v549, 0
        %v598 = vsel %vm593, %v550, 0
        %v601 = vsel %vm593, %v551, 0
        %v604 = vsel %vm593, %v552, 0
        %606 = vmatprep.subr.bf16.mxu0 %v578
        %607 = vmatpush1.bf16.msra.mxu0 %v577
        %608 = vmatprep.subr.bf16.mxu0 %v580
        %609 = vmatpush1.bf16.msra.mxu0 %v579
        %610 = vmatprep.subr.bf16.mxu0 %v582
        %611 = vmatpush1.bf16.msra.mxu0 %v581
        %612 = vmatprep.subr.bf16.mxu0 %v584
        %613 = vmatpush1.bf16.msra.mxu0 %v583
        %614 = vmatprep.subr.bf16.mxu0 0
        %615 = vmatpush1.bf16.msra.mxu0 0
        %616 = vmatprep.subr.bf16.mxu0 0
        %617 = vmatpush1.bf16.msra.mxu0 0
        %618 = vmatprep.subr.bf16.mxu0 0
        %619 = vmatpush1.bf16.msra.mxu0 0
        %620 = vmatprep.subr.bf16.mxu0 0
        %621 = vmatpush1.bf16.msra.mxu0 0
        %622 = vmatprep.subr.bf16.mxu0 0
        %623 = vmatpush1.bf16.msra.mxu0 0
        %624 = vmatprep.subr.bf16.mxu0 0
        %625 = vmatpush1.bf16.msra.mxu0 0
        %626 = vmatprep.subr.bf16.mxu0 0
        %627 = vmatpush1.bf16.msra.mxu0 0
        %628 = vmatprep.subr.bf16.mxu0 0
        %629 = vmatpush1.bf16.msra.mxu0 0
        %630 = vmatprep.subr.bf16.mxu0 0
        %631 = vmatpush1.bf16.msra.mxu0 0
        %632 = vmatprep.subr.bf16.mxu0 0
        %633 = vmatpush1.bf16.msra.mxu0 0
        %634 = vmatprep.subr.bf16.mxu0 0
        %635 = vmatpush1.bf16.msra.mxu0 0
        %636 = vmatprep.subr.bf16.mxu0 0
        %637 = vmatpush1.bf16.msra.mxu0 0
        %638 = vmatprep.mubr.bf16.mxu0 0
        %639 = vmatmul.mubr.bf16.gmra.mrb[0].mxu0 %v595
        %v640 = vpop.f32.mrb[0].mxu0
        %v641 = vadd.f32 %v496, %v640
        %v642 = vpop.f32.mrb[0].mxu0
        %v643 = vadd.f32 %v496, %v642
        %v644 = vpop.f32.mrb[0].mxu0
        %v645 = vadd.f32 %v501, %v644
        %v646 = vpop.f32.mrb[0].mxu0
        %v647 = vadd.f32 %v501, %v646
        %648 = vmatprep.mubr.bf16.mxu0 0
        %649 = vmatmul.mubr.bf16.gmra.mrb[0].mxu0 %v598
        %v650 = vpop.f32.mrb[0].mxu0
        %v651 = vadd.f32 %v506, %v650
        %v652 = vpop.f32.mrb[0].mxu0
        %v653 = vadd.f32 %v506, %v652
        %v654 = vpop.f32.mrb[0].mxu0
        %v655 = vadd.f32 %v511, %v654
        %v656 = vpop.f32.mrb[0].mxu0
        %v657 = vadd.f32 %v511, %v656
        %658 = vmatprep.mubr.bf16.mxu0 0
        %659 = vmatmul.mubr.bf16.gmra.mrb[0].mxu0 %v601
        %v660 = vpop.f32.mrb[0].mxu0
        %v661 = vadd.f32 %v516, %v660
        %v662 = vpop.f32.mrb[0].mxu0
        %v663 = vadd.f32 %v516, %v662
        %v664 = vpop.f32.mrb[0].mxu0
        %v665 = vadd.f32 %v521, %v664
        %v666 = vpop.f32.mrb[0].mxu0
        %v667 = vadd.f32 %v521, %v666
        %668 = vmatprep.mubr.bf16.mxu0 0
        %669 = vmatmul.mubr.bf16.gmra.mrb[0].mxu0 %v604
        %v670 = vpop.f32.mrb[0].mxu0
        %v671 = vadd.f32 %v526, %v670
        %v672 = vpop.f32.mrb[0].mxu0
        %v673 = vadd.f32 %v526, %v672
        %v674 = vpop.f32.mrb[0].mxu0
        %v675 = vadd.f32 %v531, %v674
        %v676 = vpop.f32.mrb[0].mxu0
        %v677 = vadd.f32 %v531, %v676
        %678 = vdwg.mxu0
        %v679 = vmax.f32 %v641, 0.0
        %v680 = vmax.f32 %v643, 0.0
        %v681 = vmax.f32 %v645, 0.0
        %v682 = vmax.f32 %v647, 0.0
        %v683 = vmax.f32 %v651, 0.0
        %v684 = vmax.f32 %v653, 0.0
        %v685 = vmax.f32 %v655, 0.0
        %v686 = vmax.f32 %v657, 0.0
        %v687 = vmax.f32 %v661, 0.0
        %v688 = vmax.f32 %v663, 0.0
        %v689 = vmax.f32 %v665, 0.0
        %v690 = vmax.f32 %v667, 0.0
        %v691 = vmax.f32 %v671, 0.0
        %v692 = vmax.f32 %v673, 0.0
        %v693 = vmax.f32 %v675, 0.0
        %v694 = vmax.f32 %v677, 0.0
        %v695 = vld [vmem:[%s4] sm:$0xf]
        %v696 = vld [vmem:[%s4 + $0x4] sm:$0xf]
        %v697 = vld [vmem:[%s4 + $0x8] sm:$0xf]
        %v698 = vld [vmem:[%s4 + $0xc] sm:$0xf]
        %v699 = vld [vmem:[%s4 + $0x10] sm:$0xf]
        %v700 = vld [vmem:[%s4 + $0x14] sm:$0xf]
        %v701 = vld [vmem:[%s4 + $0x18] sm:$0xf]
        %v702 = vld [vmem:[%s4 + $0x1c] sm:$0xf]
        %v703 = vpack.c.bf16 %v681, %v679
        %v704 = vpack.c.bf16 %v682, %v680
        %v705 = vpack.c.bf16 %v685, %v683
        %v706 = vpack.c.bf16 %v686, %v684
        %v707 = vpack.c.bf16 %v689, %v687
        %v708 = vpack.c.bf16 %v690, %v688
        %v709 = vpack.c.bf16 %v693, %v691
        %v710 = vpack.c.bf16 %v694, %v692
        %v711 = vld [vmem:[%s5] sm:$0xff]
        %v712 = vld [vmem:[%s5 + $0x8] sm:$0xff]
        %v713 = vld [vmem:[%s5 + $0x10] sm:$0xff]
        %v714 = vld [vmem:[%s5 + $0x18] sm:$0xff]
        %v715 = vld [vmem:[%s5 + $0x20] sm:$0xff]
        %v716 = vld [vmem:[%s5 + $0x28] sm:$0xff]
        %v717 = vld [vmem:[%s5 + $0x30] sm:$0xff]
        %v718 = vld [vmem:[%s5 + $0x38] sm:$0xff]
        %720 = vset.pattern.permute.xlu0 0
        %721 = vperm.xlu0 %720, %v711
        %v722 = vpop.permute.xlu0 %721
        %725 = vset.pattern.permute.xlu0 0
        %726 = vperm.xlu0 %725, %v712
        %v727 = vpop.permute.xlu0 %726
        %730 = vset.pattern.permute.xlu0 0
        %731 = vperm.xlu0 %730, %v713
        %v732 = vpop.permute.xlu0 %731
        %735 = vset.pattern.permute.xlu0 0
        %736 = vperm.xlu0 %735, %v714
        %v737 = vpop.permute.xlu0 %736
        %740 = vset.pattern.permute.xlu0 0
        %741 = vperm.xlu0 %740, %v715
        %v742 = vpop.permute.xlu0 %741
        %745 = vset.pattern.permute.xlu0 0
        %746 = vperm.xlu0 %745, %v716
        %v747 = vpop.permute.xlu0 %746
        %750 = vset.pattern.permute.xlu0 0
        %751 = vperm.xlu0 %750, %v717
        %v752 = vpop.permute.xlu0 %751
        %755 = vset.pattern.permute.xlu0 0
        %756 = vperm.xlu0 %755, %v718
        %v757 = vpop.permute.xlu0 %756
        %v767 = vunpack.c.l.b16 %v695
        %v768 = vunpack.c.l.b16 %v696
        %v769 = vunpack.c.l.b16 %v697
        %v770 = vunpack.c.l.b16 %v698
        %v771 = vunpack.c.l.b16 %v699
        %v772 = vunpack.c.l.b16 %v700
        %v773 = vunpack.c.l.b16 %v701
        %v774 = vunpack.c.l.b16 %v702
        %v775 = vpack.c.b16 %v768, %v767
        %v776 = vpack.c.b16 %v770, %v769
        %v777 = vpack.c.b16 %v772, %v771
        %v778 = vpack.c.b16 %v774, %v773
        %v780 = vsel %vm593, %v775, 0
        %v783 = vsel %vm593, %v776, 0
        %v786 = vsel %vm593, %v777, 0
        %v789 = vsel %vm593, %v778, 0
        %791 = vmatprep.subr.bf16.mxu0 %v704
        %792 = vmatpush1.bf16.msra.mxu0 %v703
        %793 = vmatprep.subr.bf16.mxu0 %v706
        %794 = vmatpush1.bf16.msra.mxu0 %v705
        %795 = vmatprep.subr.bf16.mxu0 %v708
        %796 = vmatpush1.bf16.msra.mxu0 %v707
        %797 = vmatprep.subr.bf16.mxu0 %v710
        %798 = vmatpush1.bf16.msra.mxu0 %v709
        %799 = vmatprep.subr.bf16.mxu0 0
        %800 = vmatpush1.bf16.msra.mxu0 0
        %801 = vmatprep.subr.bf16.mxu0 0
        %802 = vmatpush1.bf16.msra.mxu0 0
        %803 = vmatprep.subr.bf16.mxu0 0
        %804 = vmatpush1.bf16.msra.mxu0 0
        %805 = vmatprep.subr.bf16.mxu0 0
        %806 = vmatpush1.bf16.msra.mxu0 0
        %807 = vmatprep.subr.bf16.mxu0 0
        %808 = vmatpush1.bf16.msra.mxu0 0
        %809 = vmatprep.subr.bf16.mxu0 0
        %810 = vmatpush1.bf16.msra.mxu0 0
        %811 = vmatprep.subr.bf16.mxu0 0
        %812 = vmatpush1.bf16.msra.mxu0 0
        %813 = vmatprep.subr.bf16.mxu0 0
        %814 = vmatpush1.bf16.msra.mxu0 0
        %815 = vmatprep.subr.bf16.mxu0 0
        %816 = vmatpush1.bf16.msra.mxu0 0
        %817 = vmatprep.subr.bf16.mxu0 0
        %818 = vmatpush1.bf16.msra.mxu0 0
        %819 = vmatprep.subr.bf16.mxu0 0
        %820 = vmatpush1.bf16.msra.mxu0 0
        %821 = vmatprep.subr.bf16.mxu0 0
        %822 = vmatpush1.bf16.msra.mxu0 0
        %823 = vmatprep.mubr.bf16.mxu0 0
        %824 = vmatmul.mubr.bf16.gmra.mrb[0].mxu0 %v780
        %v825 = vpop.f32.mrb[0].mxu0
        %v826 = vadd.f32 %v722, %v825
        %v827 = vpop.f32.mrb[0].mxu0
        %v828 = vadd.f32 %v722, %v827
        %v829 = vpop.f32.mrb[0].mxu0
        %v830 = vadd.f32 %v727, %v829
        %v831 = vpop.f32.mrb[0].mxu0
        %v832 = vadd.f32 %v727, %v831
        %833 = vmatprep.mubr.bf16.mxu0 0
        %834 = vmatmul.mubr.bf16.gmra.mrb[0].mxu0 %v783
        %v835 = vpop.f32.mrb[0].mxu0
        %v836 = vadd.f32 %v732, %v835
        %v837 = vpop.f32.mrb[0].mxu0
        %v838 = vadd.f32 %v732, %v837
        %v839 = vpop.f32.mrb[0].mxu0
        %v840 = vadd.f32 %v737, %v839
        %v841 = vpop.f32.mrb[0].mxu0
        %v842 = vadd.f32 %v737, %v841
        %843 = vmatprep.mubr.bf16.mxu0 0
        %844 = vmatmul.mubr.bf16.gmra.mrb[0].mxu0 %v786
        %v845 = vpop.f32.mrb[0].mxu0
        %v846 = vadd.f32 %v742, %v845
        %v847 = vpop.f32.mrb[0].mxu0
        %v848 = vadd.f32 %v742, %v847
        %v849 = vpop.f32.mrb[0].mxu0
        %v850 = vadd.f32 %v747, %v849
        %v851 = vpop.f32.mrb[0].mxu0
        %v852 = vadd.f32 %v747, %v851
        %853 = vmatprep.mubr.bf16.mxu0 0
        %854 = vmatmul.mubr.bf16.gmra.mrb[0].mxu0 %v789
        %v855 = vpop.f32.mrb[0].mxu0
        %v856 = vadd.f32 %v752, %v855
        %v857 = vpop.f32.mrb[0].mxu0
        %v858 = vadd.f32 %v752, %v857
        %v859 = vpop.f32.mrb[0].mxu0
        %v860 = vadd.f32 %v757, %v859
        %v861 = vpop.f32.mrb[0].mxu0
        %v862 = vadd.f32 %v757, %v861
        %863 = vdwg.mxu0
        %v864 = vmax.f32 %v826, 0.0
        %v865 = vmax.f32 %v828, 0.0
        %v866 = vmax.f32 %v830, 0.0
        %v867 = vmax.f32 %v832, 0.0
        %v868 = vmax.f32 %v836, 0.0
        %v869 = vmax.f32 %v838, 0.0
        %v870 = vmax.f32 %v840, 0.0
        %v871 = vmax.f32 %v842, 0.0
        %v872 = vmax.f32 %v846, 0.0
        %v873 = vmax.f32 %v848, 0.0
        %v874 = vmax.f32 %v850, 0.0
        %v875 = vmax.f32 %v852, 0.0
        %v876 = vmax.f32 %v856, 0.0
        %v877 = vmax.f32 %v858, 0.0
        %v878 = vmax.f32 %v860, 0.0
        %v879 = vmax.f32 %v862, 0.0
        %v880 = vpack.c.bf16 %v866, %v864
        %v881 = vpack.c.bf16 %v867, %v865
        %v882 = vpack.c.bf16 %v870, %v868
        %v883 = vpack.c.bf16 %v871, %v869
        %v884 = vpack.c.bf16 %v874, %v872
        %v885 = vpack.c.bf16 %v875, %v873
        %v886 = vpack.c.bf16 %v878, %v876
        %v887 = vpack.c.bf16 %v879, %v877
        %v888 = vld [vmem:[%s6] sm:$0xf]
        %v889 = vld [vmem:[%s6 + $0x4] sm:$0xf]
        %v890 = vld [vmem:[%s6 + $0x8] sm:$0xf]
        %v891 = vld [vmem:[%s7] sm:$0xff]
        %v892 = vld [vmem:[%s7 + $0x8] sm:$0xff]
        %v893 = vld [vmem:[%s7 + $0x10] sm:$0xff]
        %895 = vset.pattern.permute.xlu0 0
        %896 = vperm.xlu0 %895, %v891
        %v897 = vpop.permute.xlu0 %896
        %900 = vset.pattern.permute.xlu0 0
        %901 = vperm.xlu0 %900, %v892
        %v902 = vpop.permute.xlu0 %901
        %905 = vset.pattern.permute.xlu0 0
        %906 = vperm.xlu0 %905, %v893
        %v907 = vpop.permute.xlu0 %906
        %v912 = vunpack.c.l.b16 %v888
        %v913 = vunpack.c.l.b16 %v889
        %v914 = vunpack.c.l.b16 %v890
        %v915 = vpack.c.b16 %v913, %v912
        %v916 = vpack.c.b16 %v914, %v914
        %919 = vmatprep.subr.bf16.mxu0 %v881
        %920 = vmatpush1.bf16.msra.mxu0 %v880
        %921 = vmatprep.subr.bf16.mxu0 %v883
        %922 = vmatpush1.bf16.msra.mxu0 %v882
        %923 = vmatprep.subr.bf16.mxu0 %v885
        %924 = vmatpush1.bf16.msra.mxu0 %v884
        %925 = vmatprep.subr.bf16.mxu0 %v887
        %926 = vmatpush1.bf16.msra.mxu0 %v886
        %927 = vmatprep.subr.bf16.mxu0 %v578
        %928 = vmatpush1.bf16.msra.mxu0 %v577
        %929 = vmatprep.subr.bf16.mxu0 %v580
        %930 = vmatpush1.bf16.msra.mxu0 %v579
        %931 = vmatprep.subr.bf16.mxu0 %v582
        %932 = vmatpush1.bf16.msra.mxu0 %v581
        %933 = vmatprep.subr.bf16.mxu0 %v584
        %934 = vmatpush1.bf16.msra.mxu0 %v583
        %935 = vmatprep.subr.bf16.mxu0 0
        %936 = vmatpush1.bf16.msra.mxu0 0
        %937 = vmatprep.subr.bf16.mxu0 0
        %938 = vmatpush1.bf16.msra.mxu0 0
        %939 = vmatprep.subr.bf16.mxu0 0
        %940 = vmatpush1.bf16.msra.mxu0 0
        %941 = vmatprep.subr.bf16.mxu0 0
        %942 = vmatpush1.bf16.msra.mxu0 0
        %943 = vmatprep.subr.bf16.mxu0 0
        %944 = vmatpush1.bf16.msra.mxu0 0
        %945 = vmatprep.subr.bf16.mxu0 0
        %946 = vmatpush1.bf16.msra.mxu0 0
        %947 = vmatprep.subr.bf16.mxu0 0
        %948 = vmatpush1.bf16.msra.mxu0 0
        %949 = vmatprep.subr.bf16.mxu0 0
        %950 = vmatpush1.bf16.msra.mxu0 0
        %951 = vmatprep.mubr.bf16.mxu0 0
        %952 = vmatmul.mubr.bf16.gmra.mrb[0].mxu0 %v915
        %v953 = vpop.f32.mrb[0].mxu0
        %v954 = vadd.f32 %v897, %v953
        %v955 = vpop.f32.mrb[0].mxu0
        %v956 = vadd.f32 %v897, %v955
        %v957 = vpop.f32.mrb[0].mxu0
        %v958 = vadd.f32 %v902, %v957
        %v959 = vpop.f32.mrb[0].mxu0
        %v960 = vadd.f32 %v902, %v959
        %961 = vmatprep.mubr.bf16.mxu0 0
        %962 = vmatmul.mubr.bf16.gmra.mrb[0].mxu0 %v916
        %v963 = vpop.f32.mrb[0].mxu0
        %v964 = vadd.f32 %v907, %v963
        %v965 = vpop.f32.mrb[0].mxu0
        %v966 = vadd.f32 %v907, %v965
        %v967 = vpop.f32.mrb[0].mxu0
        %v968 = vpop.f32.mrb[0].mxu0
        %969 = vdwg.mxu0
        %v970 = vpack.c.bf16 %v958, %v954
        %v971 = vpack.c.bf16 %v960, %v956
        %v972 = vpack.c.bf16 %v964, %v964
        %v973 = vpack.c.bf16 %v966, %v966
        %v978 = vunpack.c.l.b16 %v970
        %v979 = vunpack.c.l.b16 %v971
        %v980 = vunpack.c.h.b16 %v970
        %v981 = vunpack.c.h.b16 %v971
        %v982 = vunpack.c.l.b16 %v972
        %v983 = vunpack.c.l.b16 %v973
        %v984 = vpack.c.b16 %v979, %v978
        %v985 = vpack.c.b16 %v981, %v980
        %v986 = vpack.c.b16 %v983, %v982
        %990 = vst [vmem:[%s423] sm:$0xff] %v984
        %991 = vst [vmem:[%s423 + $0x8] sm:$0xff] %v985
        %992 = vst [vmem:[%s423 + $0x10] sm:$0xff] %v986
        %v993 = vld [vmem:[%s449] sm:$0x7]
        %v994 = vld [vmem:[%s455] sm:$0x3f]
        %996 = vset.pattern.permute.xlu0 0
        %997 = vperm.xlu0 %996, %v994
        %v998 = vpop.permute.xlu0 %997
        %1000 = vmatprep.subr.bf16.mxu0 %v881
        %1001 = vmatpush1.bf16.msra.mxu0 %v880
        %1002 = vmatprep.subr.bf16.mxu0 %v883
        %1003 = vmatpush1.bf16.msra.mxu0 %v882
        %1004 = vmatprep.subr.bf16.mxu0 %v885
        %1005 = vmatpush1.bf16.msra.mxu0 %v884
        %1006 = vmatprep.subr.bf16.mxu0 %v887
        %1007 = vmatpush1.bf16.msra.mxu0 %v886
        %1008 = vmatprep.subr.bf16.mxu0 %v578
        %1009 = vmatpush1.bf16.msra.mxu0 %v577
        %1010 = vmatprep.subr.bf16.mxu0 %v580
        %1011 = vmatpush1.bf16.msra.mxu0 %v579
        %1012 = vmatprep.subr.bf16.mxu0 %v582
        %1013 = vmatpush1.bf16.msra.mxu0 %v581
        %1014 = vmatprep.subr.bf16.mxu0 %v584
        %1015 = vmatpush1.bf16.msra.mxu0 %v583
        %1016 = vmatprep.subr.bf16.mxu0 0
        %1017 = vmatpush1.bf16.msra.mxu0 0
        %1018 = vmatprep.subr.bf16.mxu0 0
        %1019 = vmatpush1.bf16.msra.mxu0 0
        %1020 = vmatprep.subr.bf16.mxu0 0
        %1021 = vmatpush1.bf16.msra.mxu0 0
        %1022 = vmatprep.subr.bf16.mxu0 0
        %1023 = vmatpush1.bf16.msra.mxu0 0
        %1024 = vmatprep.subr.bf16.mxu0 0
        %1025 = vmatpush1.bf16.msra.mxu0 0
        %1026 = vmatprep.subr.bf16.mxu0 0
        %1027 = vmatpush1.bf16.msra.mxu0 0
        %1028 = vmatprep.subr.bf16.mxu0 0
        %1029 = vmatpush1.bf16.msra.mxu0 0
        %1030 = vmatprep.subr.bf16.mxu0 0
        %1031 = vmatpush1.bf16.msra.mxu0 0
        %1032 = vmatprep.mubr.bf16.mxu0 0
        %1033 = vmatmul.mubr.bf16.gmra.mrb[0].mxu0 %v993
        %v1034 = vpop.f32.mrb[0].mxu0
        %v1035 = vadd.f32 %v998, %v1034
        %v1036 = vpop.f32.mrb[0].mxu0
        %v1037 = vadd.f32 %v998, %v1036
        %v1038 = vpop.f32.mrb[0].mxu0
        %v1039 = vpop.f32.mrb[0].mxu0
        %1040 = vdwg.mxu0
        %v1041 = vpack.c.bf16 %v1035, %v1035
        %v1042 = vpack.c.bf16 %v1037, %v1037
        %v1045 = vunpack.c.l.b16 %v1041
        %v1046 = vunpack.c.l.b16 %v1042
        %v1047 = vpack.c.b16 %v1046, %v1045
        %1049 = vst [vmem:[%s466] sm:$0x77] %v1047
        %s1050 = sand.u32 %s264, 1
        %s1051 = scalar_lea.sflag [#allocation5], %s1050
        %s1052 = sand.u32 %s264, 1
        %s1053 = smul.addr %s1052, 24
        %s1054 = scalar_lea.vmem [#allocation4], %s1053
        %s1055 = smul.u32 2, %s37
        %p1056 = scmp.lt.s32.totalorder %s36, 1
        %s1057 = scalar_select %p1056, %s36, 1
        %p1058 = scmp.lt.s32.totalorder %s1055, 1
        %s1059 = scalar_select %p1058, %s1055, 1
        %s1060 = smul.addr %s1057, 2
        %s1061 = sadd.s32 %s1059, %s1060
        %s1062 = smul.addr %s1061, 4
        %s1063 = scalar_lea.vmem %s11, %s1062
        // Predicated region
        $region57: #{tpu_custom_call.1} parent=55 // pred_check
          %p1064 = pneg %p274
        $region58: #{tpu_custom_call.1} parent=55 // pred_check_branch
          %1066 = sbr.rel (%p1064) target = $region60
        $region59: #{tpu_custom_call.1} parent=55 // pred_region
          %s1067 = smul.u32 2, %s37
          %s1069 = ssub.s32 384, 384
          %1070 = vsyncadd %s1051, %s1069
          %s1071 = smul.addr %s36, 6
          %s1072 = sadd.s32 %s1067, %s1071
          %s1073 = smul.addr %s1072, 64
          %s1074 = scalar_lea.hbm %s10, %s1073
          %s1075 = sshll.u32 %s1054, 4
          %s1076 = int_to_ptr.vmem [resolvable:$true] %s1075
          %1081 = dma.vmem_to_hbm [thread:$0]  %s1076, 384, %s1074, %s1051, 128, 128, 8
        $region60: #{tpu_custom_call.1} parent=55 // pred_fallthru
          _
        // Predicated region
        $region61: #{tpu_custom_call.1} parent=55 // pred_check
          %p1082 = pneg %p302
        $region62: #{tpu_custom_call.1} parent=55 // pred_check_branch
          %1084 = sbr.rel (%p1082) target = $region64
        $region63: #{tpu_custom_call.1} parent=55 // pred_region
          %s1085 = smul.u32 2, %s37
        $region64: #{tpu_custom_call.1} parent=55 // pred_fallthru
          _
      $region56: #{tpu_custom_call.1} parent=5 // pred_fallthru
        _
      %p1086 = scmp.le.s32.totalorder 2, %s27
      // Predicated region
      $region65: #{tpu_custom_call.1} parent=5 // pred_check
        %p1087 = pneg %p1086
      $region66: #{tpu_custom_call.1} parent=5 // pred_check_branch
        %1089 = sbr.rel (%p1087) target = $region68
      $region67: #{tpu_custom_call.1} parent=5 // pred_region
        %s1090 = ssub.s32 %s27, 2
        // Predicated region
        $region69: #{tpu_custom_call.1} parent=67 // pred_check
          %p1091 = pneg %p280
        $region70: #{tpu_custom_call.1} parent=67 // pred_check_branch
          %1093 = sbr.rel (%p1091) target = $region72
        $region71: #{tpu_custom_call.1} parent=67 // pred_region
          %s1094 = sand.u32 %s265, 1
          %s1095 = scalar_lea.sflag [#allocation5], %s1094
          %s1096 = sand.u32 %s265, 1
          %s1097 = smul.addr %s1096, 24
          %s1098 = scalar_lea.vmem [#allocation4], %s1097
          %1099 = dma.done %s1095, 384
        $region72: #{tpu_custom_call.1} parent=67 // pred_fallthru
          _
        // Predicated region
        $region73: #{tpu_custom_call.1} parent=67 // pred_check
          %p1100 = pneg %p308
        $region74: #{tpu_custom_call.1} parent=67 // pred_check_branch
          %1102 = sbr.rel (%p1100) target = $region76
        $region75: #{tpu_custom_call.1} parent=67 // pred_region
          %s1103 = smul.u32 2, %s39
          %p1104 = scmp.lt.s32.totalorder %s38, 1
          %s1105 = scalar_select %p1104, %s38, 1
          %p1106 = scmp.lt.s32.totalorder %s1103, 1
          %s1107 = scalar_select %p1106, %s1103, 1
          %s1108 = smul.addr %s1105, 2
          %s1109 = sadd.s32 %s1107, %s1108
          %s1110 = smul.addr %s1109, 4
          %s1111 = scalar_lea.vmem %s11, %s1110
        $region76: #{tpu_custom_call.1} parent=67 // pred_fallthru
          _
      $region68: #{tpu_custom_call.1} parent=5 // pred_fallthru
        _
    $region6: #{tpu_custom_call.1} parent=1 // loop_footer
      %s31 = sadd.s32 1, %s27
    $region7: #{tpu_custom_call.1} parent=1 // loop_footer_branch
      %26 = sbr.rel target = $region3
    $region8: #{tpu_custom_call.1} parent=1 // loop_exit
      _
    %1112 = vsyncpa [#allocation5], 1
    %s1113 = scalar_lea.sflag [#allocation5], 1
    %1114 = vsyncpa %s1113, 1

</llo_original>
